<compile_context>
chip_gen: v7x
topology: tpu7x:2x2x1
jax: 0.10.0
libtpu: 0.0.40
codegen_flags: <defaults>
</compile_context>

<pallas_src>
import math
import functools

import jax
import jax.numpy as jnp
from jax.experimental import pallas as pl
from jax.experimental.pallas import tpu as pltpu


def _attn_kernel(x_ref, w_ref, b_ref, o_ref, *, batch, seq, head_size, d_pad):
    # x_ref: (B*S, H)  w_ref: (H, 3*DP)  b_ref: (1, 3*DP)  o_ref: (B*S, DP)
    x = x_ref[...]

    # Fused QKV projection: one MXU push instead of three tiny ones.
    qkv = jnp.dot(x, w_ref[...], preferred_element_type=jnp.float32) + b_ref[...]
    q = qkv[:, 0 * d_pad:1 * d_pad]   # lane-tile-aligned static slices
    k = qkv[:, 1 * d_pad:2 * d_pad]
    v = qkv[:, 2 * d_pad:3 * d_pad]

    # scores = q @ k^T without materializing a transpose: contract on axis 1 of
    # both operands.  Zero pad columns of q/k contribute nothing.
    scores = jax.lax.dot_general(
        q, k, dimension_numbers=(((1,), (1,)), ((), ())),
        preferred_element_type=jnp.float32)                    # (B*S, B*S)

    # Block-diagonal causal mask built in-kernel (batch folded into the rows):
    # keep (i, j) iff rows i, j are in the same batch block and j <= i.
    # Pure iota/compare/boolean VPU work; small static unroll over batches
    # avoids vector integer division.
    n = batch * seq
    row = jax.lax.broadcasted_iota(jnp.int32, (n, n), 0)
    col = jax.lax.broadcasted_iota(jnp.int32, (n, n), 1)
    same_batch = jnp.zeros((n, n), dtype=jnp.bool_)
    for b in range(batch):
        lo, hi = b * seq, (b + 1) * seq
        same_batch = same_batch | (((row >= lo) & (row < hi)) &
                                   ((col >= lo) & (col < hi)))
    keep = same_batch & (row >= col)
    # Large finite negative: exp underflows to exactly 0 (same result as -inf,
    # but robust against fully-masked rows).
    scores = jnp.where(keep, scores, jnp.float32(-1e30))

    # Numerically stable softmax over the last axis (matches F.softmax).
    m = jnp.max(scores, axis=-1, keepdims=True)
    e = jnp.exp(scores - m)
    denom = jnp.sum(e, axis=-1, keepdims=True)
    w = e * pl.reciprocal(denom, approx=True)

    # Reference quirk: FLOOR division of the softmax by sqrt(head_size)
    # (values are non-negative, so floor(w / s) == floor_divide(w, s)).
    w = jnp.floor(w / jnp.float32(math.sqrt(head_size)))

    out = jnp.dot(w, v, preferred_element_type=jnp.float32)    # (B*S, DP)
    o_ref[...] = out.astype(o_ref.dtype)                       # lane-dense store


def single_head_attention(x, wq, wk, wv, bq, bk, bv, head_size):
    """x: (B, S, H) f32; weights (H, D); biases (1, D).  Returns (B, S, D)."""
    B, S, H = x.shape
    D = wq.shape[1]
    DP = 128                      # pad each projection to one full lane tile
    BS = B * S

    def pad_cols(a):
        return jnp.pad(a, ((0, 0), (0, DP - D)))

    # Fuse + pad: zero columns are exactly neutral (q/k padding adds 0 to the
    # scores; v padding only produces zero output columns sliced off below).
    w_qkv = jnp.concatenate([pad_cols(wq), pad_cols(wk), pad_cols(wv)], axis=1)
    b_qkv = jnp.concatenate([pad_cols(bq), pad_cols(bk), pad_cols(bv)], axis=1)

    x2d = x.reshape(BS, H)        # fold batch into the matmul M dimension

    kernel = functools.partial(
        _attn_kernel, batch=B, seq=S, head_size=head_size, d_pad=DP)

    out = pl.pallas_call(
        kernel,
        out_shape=jax.ShapeDtypeStruct((BS, DP), jnp.float32),
        grid_spec=pltpu.PrefetchScalarGridSpec(
            num_scalar_prefetch=0,
            grid=(1,),  # whole problem in one step: grid overhead dominates at these shapes
            in_specs=[
                pl.BlockSpec((BS, H), lambda i: (0, 0)),        # x, batch-folded
                pl.BlockSpec((H, 3 * DP), lambda i: (0, 0)),    # fused W_qkv
                pl.BlockSpec((1, 3 * DP), lambda i: (0, 0)),    # fused b_qkv
            ],
            out_specs=pl.BlockSpec((BS, DP), lambda i: (0, 0)),
        ),
        compiler_params=pltpu.CompilerParams(
            dimension_semantics=("arbitrary",)),
    )(x2d, w_qkv, b_qkv)

    return out[:, :D].reshape(B, S, D)


def reference(x, wq, wk, wv, bq, bk, bv, head_size):
    q = x @ wq + bq
    k = x @ wk + bk
    v = x @ wv + bv
    scores = jnp.einsum("bqd,bkd->bqk", q, k)
    S = x.shape[1]
    mask = jnp.tril(jnp.ones((S, S), dtype=jnp.float32))
    scores = jnp.where(mask[None] == 0.0, -jnp.inf, scores)
    w = jax.nn.softmax(scores, axis=-1)
    w = jnp.floor(w / math.sqrt(head_size))
    return jnp.einsum("bqk,bkd->bqd", w, v)


if __name__ == "__main__":
    # Small config consistent with the module:
    #   batch=2, max_seq=seq=8, hidden_dim=32, head_size=16
    B, S, H, D = 2, 8, 32, 16

    key = jax.random.PRNGKey(0)
    kx, kq, kk, kv, kbq, kbk, kbv = jax.random.split(key, 7)

    x = jax.random.normal(kx, (B, S, H), dtype=jnp.float32)

    bound = 1.0 / math.sqrt(H)    # nn.Linear-style uniform init, deterministic
    wq = jax.random.uniform(kq, (H, D), jnp.float32, -bound, bound)
    wk = jax.random.uniform(kk, (H, D), jnp.float32, -bound, bound)
    wv = jax.random.uniform(kv, (H, D), jnp.float32, -bound, bound)
    bq = jax.random.uniform(kbq, (1, D), jnp.float32, -bound, bound)
    bk = jax.random.uniform(kbk, (1, D), jnp.float32, -bound, bound)
    bv = jax.random.uniform(kbv, (1, D), jnp.float32, -bound, bound)

    out = single_head_attention(x, wq, wk, wv, bq, bk, bv, head_size=D)
    out = jax.block_until_ready(out)

    ref = reference(x, wq, wk, wv, bq, bk, bv, head_size=D)
    assert out.shape == (B, S, D)
    assert jnp.allclose(out, ref, atol=1e-5, rtol=1e-5)

    print("KERNEL_OK")
</pallas_src>

<mosaic_0001>
module attributes {stable_mosaic.version = 11 : i64} {
  func.func @_attn_kernel(%arg0: i32, %arg1: memref<16x32xf32, #tpu.memory_space<vmem>>, %arg2: memref<32x384xf32, #tpu.memory_space<vmem>>, %arg3: memref<1x384xf32, #tpu.memory_space<vmem>>, %arg4: memref<16x128xf32, #tpu.memory_space<vmem>>) attributes {dimension_semantics = [#tpu.dimension_semantics<arbitrary>], iteration_bounds = array<i64: 1>, scalar_prefetch = 0 : i64, scratch_operands = 0 : i64, tpu.core_type = #tpu.core_type<tc>, window_params = [{pipeline_mode = #tpu.pipeline_mode<synchronous>, transform_indices = @transform_0, window_bounds = array<i64: 16, 32>}, {pipeline_mode = #tpu.pipeline_mode<synchronous>, transform_indices = @transform_1, window_bounds = array<i64: 32, 384>}, {pipeline_mode = #tpu.pipeline_mode<synchronous>, transform_indices = @transform_2, window_bounds = array<i64: 1, 384>}, {pipeline_mode = #tpu.pipeline_mode<synchronous>, transform_indices = @transform_3, window_bounds = array<i64: 16, 128>}]} {
    %c0 = arith.constant 0 : index
    %c0_0 = arith.constant 0 : index
    %0 = vector.load %arg1[%c0, %c0_0] : memref<16x32xf32, #tpu.memory_space<vmem>>, vector<16x32xf32>
    %c0_1 = arith.constant 0 : index
    %c0_2 = arith.constant 0 : index
    %1 = vector.load %arg2[%c0_1, %c0_2] : memref<32x384xf32, #tpu.memory_space<vmem>>, vector<32x384xf32>
    %cst = arith.constant dense<0.000000e+00> : vector<16x384xf32>
    %2 = tpu.matmul %0, %1, %cst {dimension_numbers = #tpu.dot_dimension_numbers<[1], [0], [0], [1], [0, 0, 1, 1], [], []>} : vector<16x32xf32>, vector<32x384xf32>, vector<16x384xf32> -> vector<16x384xf32>
    %c0_3 = arith.constant 0 : index
    %c0_4 = arith.constant 0 : index
    %3 = vector.load %arg3[%c0_3, %c0_4] : memref<1x384xf32, #tpu.memory_space<vmem>>, vector<1x384xf32>
    %4 = vector.broadcast %3 : vector<1x384xf32> to vector<16x384xf32>
    %5 = arith.addf %2, %4 : vector<16x384xf32>
    %6 = vector.extract_strided_slice %5 {offsets = [0, 0], sizes = [16, 128], strides = [1, 1]} : vector<16x384xf32> to vector<16x128xf32>
    %7 = vector.extract_strided_slice %5 {offsets = [0, 128], sizes = [16, 128], strides = [1, 1]} : vector<16x384xf32> to vector<16x128xf32>
    %8 = vector.extract_strided_slice %5 {offsets = [0, 256], sizes = [16, 128], strides = [1, 1]} : vector<16x384xf32> to vector<16x128xf32>
    %cst_5 = arith.constant dense<0.000000e+00> : vector<16x16xf32>
    %9 = tpu.matmul %6, %7, %cst_5 {dimension_numbers = #tpu.dot_dimension_numbers<[1], [1], [0], [0], [0, 0, 1, 0], [], []>} : vector<16x128xf32>, vector<16x128xf32>, vector<16x16xf32> -> vector<16x16xf32>
    %10 = tpu.iota {dimensions = array<i32: 0>} : vector<16x16xi32>
    %11 = tpu.iota {dimensions = array<i32: 1>} : vector<16x16xi32>
    %false = arith.constant false
    %12 = vector.broadcast %false : i1 to vector<16x16xi1>
    %c0_i32 = arith.constant 0 : i32
    %13 = vector.broadcast %c0_i32 : i32 to vector<16x16xi32>
    %14 = arith.cmpi sge, %10, %13 : vector<16x16xi32>
    %c8_i32 = arith.constant 8 : i32
    %15 = vector.broadcast %c8_i32 : i32 to vector<16x16xi32>
    %16 = arith.cmpi slt, %10, %15 : vector<16x16xi32>
    %17 = arith.andi %14, %16 : vector<16x16xi1>
    %c0_i32_6 = arith.constant 0 : i32
    %18 = vector.broadcast %c0_i32_6 : i32 to vector<16x16xi32>
    %19 = arith.cmpi sge, %11, %18 : vector<16x16xi32>
    %c8_i32_7 = arith.constant 8 : i32
    %20 = vector.broadcast %c8_i32_7 : i32 to vector<16x16xi32>
    %21 = arith.cmpi slt, %11, %20 : vector<16x16xi32>
    %22 = arith.andi %19, %21 : vector<16x16xi1>
    %23 = arith.andi %17, %22 : vector<16x16xi1>
    %24 = arith.ori %12, %23 : vector<16x16xi1>
    %c8_i32_8 = arith.constant 8 : i32
    %25 = vector.broadcast %c8_i32_8 : i32 to vector<16x16xi32>
    %26 = arith.cmpi sge, %10, %25 : vector<16x16xi32>
    %c16_i32 = arith.constant 16 : i32
    %27 = vector.broadcast %c16_i32 : i32 to vector<16x16xi32>
    %28 = arith.cmpi slt, %10, %27 : vector<16x16xi32>
    %29 = arith.andi %26, %28 : vector<16x16xi1>
    %c8_i32_9 = arith.constant 8 : i32
    %30 = vector.broadcast %c8_i32_9 : i32 to vector<16x16xi32>
    %31 = arith.cmpi sge, %11, %30 : vector<16x16xi32>
    %c16_i32_10 = arith.constant 16 : i32
    %32 = vector.broadcast %c16_i32_10 : i32 to vector<16x16xi32>
    %33 = arith.cmpi slt, %11, %32 : vector<16x16xi32>
    %34 = arith.andi %31, %33 : vector<16x16xi1>
    %35 = arith.andi %29, %34 : vector<16x16xi1>
    %36 = arith.ori %24, %35 : vector<16x16xi1>
    %37 = arith.cmpi sge, %10, %11 : vector<16x16xi32>
    %38 = arith.andi %36, %37 : vector<16x16xi1>
    %cst_11 = arith.constant -1.000000e+30 : f32
    %39 = vector.broadcast %cst_11 : f32 to vector<16x16xf32>
    %40 = arith.select %38, %9, %39 : vector<16x16xi1>, vector<16x16xf32>
    %cst_12 = arith.constant dense<0xFF800000> : vector<16xf32>
    %41 = vector.multi_reduction <maximumf>, %40, %cst_12 [1] : vector<16x16xf32> to vector<16xf32>
    %42 = vector.shape_cast %41 : vector<16xf32> to vector<16x1xf32>
    %43 = vector.broadcast %42 : vector<16x1xf32> to vector<16x16xf32>
    %44 = arith.subf %40, %43 : vector<16x16xf32>
    %45 = math.exp %44 : vector<16x16xf32>
    %cst_13 = arith.constant dense<0.000000e+00> : vector<16xf32>
    %46 = vector.multi_reduction <add>, %45, %cst_13 [1] : vector<16x16xf32> to vector<16xf32>
    %47 = vector.shape_cast %46 : vector<16xf32> to vector<16x1xf32>
    %48 = tpu.reciprocal %47 {approx = true} : vector<16x1xf32> -> vector<16x1xf32>
    %49 = vector.broadcast %48 : vector<16x1xf32> to vector<16x16xf32>
    %50 = arith.mulf %45, %49 : vector<16x16xf32>
    %cst_14 = arith.constant 4.000000e+00 : f32
    %51 = vector.broadcast %cst_14 : f32 to vector<16x16xf32>
    %52 = arith.divf %50, %51 : vector<16x16xf32>
    %53 = math.floor %52 : vector<16x16xf32>
    %cst_15 = arith.constant dense<0.000000e+00> : vector<16x128xf32>
    %54 = tpu.matmul %53, %8, %cst_15 {dimension_numbers = #tpu.dot_dimension_numbers<[1], [0], [0], [1], [0, 0, 1, 1], [], []>} : vector<16x16xf32>, vector<16x128xf32>, vector<16x128xf32> -> vector<16x128xf32>
    %c0_16 = arith.constant 0 : index
    %c0_17 = arith.constant 0 : index
    %55 = vector.load %arg4[%c0_16, %c0_17] : memref<16x128xf32, #tpu.memory_space<vmem>>, vector<16x128xf32>
    tpu.vector_store %arg4[%c0_16, %c0_17], %54 {strides = array<i32>} : memref<16x128xf32, #tpu.memory_space<vmem>>, vector<16x128xf32>,
    return
  }
  func.func @transform_0(%arg0: i32) -> (i32, i32) {
    %c0_i32 = arith.constant 0 : i32
    %c0_i32_0 = arith.constant 0 : i32
    %c0_i32_1 = arith.constant 0 : i32
    return %c0_i32, %c0_i32_0 : i32, i32
  }
  func.func @transform_1(%arg0: i32) -> (i32, i32) {
    %c0_i32 = arith.constant 0 : i32
    %c0_i32_0 = arith.constant 0 : i32
    %c0_i32_1 = arith.constant 0 : i32
    return %c0_i32, %c0_i32_0 : i32, i32
  }
  func.func @transform_2(%arg0: i32) -> (i32, i32) {
    %c0_i32 = arith.constant 0 : i32
    %c0_i32_0 = arith.constant 0 : i32
    %c0_i32_1 = arith.constant 0 : i32
    return %c0_i32, %c0_i32_0 : i32, i32
  }
  func.func @transform_3(%arg0: i32) -> (i32, i32) {
    %c0_i32 = arith.constant 0 : i32
    %c0_i32_0 = arith.constant 0 : i32
    %c0_i32_1 = arith.constant 0 : i32
    return %c0_i32, %c0_i32_0 : i32, i32
  }
}

</mosaic_0001>

<llo_original>
// kernel: tpu_custom_call.1
$region0: #{tpu_custom_call.1}
  #allocation0 [shape = 'u32[]', space=smem, size = 0x4, offset = 0x4, fixed_abs, tag = 'smem constant byte address 0x4 - core index']
  #allocation1 [shape = 'u32[144,128]{1,0:T(1,128)}', space=vmem, size = 0x12000, scoped, tag = 'internal scratch']
  %s0 = inlined_call_operand.hbm [shape: f32[16,32], index: 0, kind: input, shape index: {}]
  %s1 = inlined_call_operand.hbm [shape: f32[32,384], index: 1, kind: input, shape index: {}]
  %s2 = inlined_call_operand.vmem [shape: f32[1,384], index: 2, kind: input, shape index: {}]
  %s3 = inlined_call_operand.hbm [shape: f32[16,128], index: 3, kind: output, shape index: {}]
  %s4 = sld [smem:[#allocation0]]
  $region30: #{tpu_custom_call.1} parent=0
    _
  %s6 = ssub.s32 1, %s4
  %s7 = scalar_select 0, %s6, %s4
  $region1: #{tpu_custom_call.1} parent=0
    #allocation2 [shape = 'u8[8192]{0}', space=vmem, size = 0x2000, scoped, tag = 'input window, operand 0, single buffered']
    #allocation3 [shape = 's32[1]{0}', space=sflag, size = 0x4, scoped, tag = 'scoped memory for tpu_custom_call.1']
    #allocation4 [shape = 's32[1]{0}', space=sflag, size = 0x4, scoped, tag = 'scoped memory for tpu_custom_call.1']
    #allocation5 [shape = 'u8[49152]{0}', space=vmem, size = 0xc000, scoped, tag = 'input window, operand 1, single buffered']
    #allocation6 [shape = 's32[1]{0}', space=sflag, size = 0x4, scoped, tag = 'scoped memory for tpu_custom_call.1']
    #allocation7 [shape = 'u8[8192]{0}', space=vmem, size = 0x2000, scoped, tag = 'output window, operand 0, single buffered']
    %8 = vsyncpa [#allocation3], 0
    %9 = vsyncpa [#allocation6], 0
    %10 = vsyncpa [#allocation4], 0
    // Predicated region
    $region2: #{tpu_custom_call.1} parent=1 // pred_check
      _
    $region3: #{tpu_custom_call.1} parent=1 // pred_check_branch
      %12 = sbr.rel (0) target = $region5
    $region4: #{tpu_custom_call.1} parent=1 // pred_region
      %s14 = ssub.s32 256, 256
      %15 = vsyncadd [#allocation3], %s14
      %s16 = sshll.u32 [#allocation2], 4
      %s17 = int_to_ptr.vmem [resolvable:$true] %s16
      %22 = dma.hbm_to_vmem [thread:$0]  %s0, 256, %s17, [#allocation3], 128, 128, 8
    $region5: #{tpu_custom_call.1} parent=1 // pred_fallthru
      _
    // Predicated region
    $region6: #{tpu_custom_call.1} parent=1 // pred_check
      _
    $region7: #{tpu_custom_call.1} parent=1 // pred_check_branch
      %24 = sbr.rel (0) target = $region9
    $region8: #{tpu_custom_call.1} parent=1 // pred_region
      %s26 = ssub.s32 1536, 1536
      %27 = vsyncadd [#allocation6], %s26
      %s28 = sshll.u32 [#allocation5], 4
      %s29 = int_to_ptr.vmem [resolvable:$true] %s28
      %34 = dma.hbm_to_vmem [thread:$0]  %s1, 1536, %s29, [#allocation6], 384, 384, 24
    $region9: #{tpu_custom_call.1} parent=1 // pred_fallthru
      _
    // Predicated region
    $region10: #{tpu_custom_call.1} parent=1 // pred_check
      _
    $region11: #{tpu_custom_call.1} parent=1 // pred_check_branch
      %36 = sbr.rel (0) target = $region13
    $region12: #{tpu_custom_call.1} parent=1 // pred_region
      _
    $region13: #{tpu_custom_call.1} parent=1 // pred_fallthru
      _
    // Predicated region
    $region14: #{tpu_custom_call.1} parent=1 // pred_check
      _
    $region15: #{tpu_custom_call.1} parent=1 // pred_check_branch
      %38 = sbr.rel (0) target = $region17
    $region16: #{tpu_custom_call.1} parent=1 // pred_region
      %39 = dma.done [#allocation3], 256
    $region17: #{tpu_custom_call.1} parent=1 // pred_fallthru
      _
    // Predicated region
    $region18: #{tpu_custom_call.1} parent=1 // pred_check
      _
    $region19: #{tpu_custom_call.1} parent=1 // pred_check_branch
      %41 = sbr.rel (0) target = $region21
    $region20: #{tpu_custom_call.1} parent=1 // pred_region
      %42 = dma.done [#allocation6], 1536
    $region21: #{tpu_custom_call.1} parent=1 // pred_fallthru
      _
    %v43 = vld [vmem:[#allocation2] sm:$0xff]
    %v44 = vld [vmem:[#allocation2 + $0x8] sm:$0xff]
    %v45 = vld [vmem:[#allocation5] sm:$0xff]
    %v46 = vld [vmem:[#allocation5 + $0x8] sm:$0xff]
    %v47 = vld [vmem:[#allocation5 + $0x10] sm:$0xff]
    %v48 = vld [vmem:[#allocation5 + $0x18] sm:$0xff]
    %v49 = vld [vmem:[#allocation5 + $0x20] sm:$0xff]
    %v50 = vld [vmem:[#allocation5 + $0x28] sm:$0xff]
    %v51 = vld [vmem:[#allocation5 + $0x30] sm:$0xff]
    %v52 = vld [vmem:[#allocation5 + $0x38] sm:$0xff]
    %v53 = vld [vmem:[#allocation5 + $0x40] sm:$0xff]
    %v54 = vld [vmem:[#allocation5 + $0x48] sm:$0xff]
    %v55 = vld [vmem:[#allocation5 + $0x50] sm:$0xff]
    %v56 = vld [vmem:[#allocation5 + $0x58] sm:$0xff]
    %v57 = vld [vmem:[%s2] sm:$0x7]
    %v59 = vlaneseq
    %v60 = vshrl.u32 %v59, 7
    %v61 = vsub.s32 0, %v60
    %v62 = vrot.slane %v57, %v61
    %v63 = vlaneseq
    %v64 = vshrl.u32 %v63, 7
    %v65 = vsub.s32 1, %v64
    %v66 = vrot.slane %v57, %v65
    %v67 = vlaneseq
    %v68 = vshrl.u32 %v67, 7
    %v69 = vsub.s32 2, %v68
    %v70 = vrot.slane %v57, %v69
    %vm74 = vcmask 261120
    %v76 = vsel %vm74, %v43, 0
    %v79 = vsel %vm74, %v44, 0
    %81 = vmatprep.subr.mxu0 %v46
    %82 = vmatpush1.msra.mxu0 %v45
    %83 = vmatprep.subr.mxu0 %v49
    %84 = vmatpush1.msra.mxu0 %v48
    %85 = vmatprep.subr.mxu0 %v52
    %86 = vmatpush1.msra.mxu0 %v51
    %87 = vmatprep.subr.mxu0 %v55
    %88 = vmatpush1.msra.mxu0 %v54
    %89 = vmatprep.subr.mxu0 0.0
    %90 = vmatpush1.msra.mxu0 0.0
    %91 = vmatprep.subr.mxu0 0.0
    %92 = vmatpush1.msra.mxu0 0.0
    %93 = vmatprep.subr.mxu0 0.0
    %94 = vmatpush1.msra.mxu0 0.0
    %95 = vmatprep.subr.mxu0 0.0
    %96 = vmatpush1.msra.mxu0 0.0
    %97 = vmatprep.subr.mxu0 0.0
    %98 = vmatpush1.msra.mxu0 0.0
    %99 = vmatprep.subr.mxu0 0.0
    %100 = vmatpush1.msra.mxu0 0.0
    %101 = vmatprep.subr.mxu0 0.0
    %102 = vmatpush1.msra.mxu0 0.0
    %103 = vmatprep.subr.mxu0 0.0
    %104 = vmatpush1.msra.mxu0 0.0
    %105 = vmatprep.subr.mxu0 0.0
    %106 = vmatpush1.msra.mxu0 0.0
    %107 = vmatprep.subr.mxu0 0.0
    %108 = vmatpush1.msra.mxu0 0.0
    %109 = vmatprep.subr.mxu0 0.0
    %110 = vmatpush1.msra.mxu0 0.0
    %111 = vmatprep.subr.mxu0 0.0
    %112 = vmatpush1.msra.mxu0 0.0
    %113 = vmatprep.subr.mxu0 0.0
    %114 = vmatpush1.msra.mxu0 0.0
    %115 = vmatprep.subr.mxu0 0.0
    %116 = vmatpush1.msra.mxu0 0.0
    %117 = vmatprep.subr.mxu0 0.0
    %118 = vmatpush1.msra.mxu0 0.0
    %119 = vmatprep.subr.mxu0 0.0
    %120 = vmatpush1.msra.mxu0 0.0
    %121 = vmatprep.subr.mxu0 0.0
    %122 = vmatpush1.msra.mxu0 0.0
    %123 = vmatprep.subr.mxu0 0.0
    %124 = vmatpush1.msra.mxu0 0.0
    %125 = vmatprep.subr.mxu0 0.0
    %126 = vmatpush1.msra.mxu0 0.0
    %127 = vmatprep.subr.mxu0 0.0
    %128 = vmatpush1.msra.mxu0 0.0
    %129 = vmatprep.subr.mxu0 0.0
    %130 = vmatpush1.msra.mxu0 0.0
    %131 = vmatprep.subr.mxu0 0.0
    %132 = vmatpush1.msra.mxu0 0.0
    %133 = vmatprep.subr.mxu0 0.0
    %134 = vmatpush1.msra.mxu0 0.0
    %135 = vmatprep.subr.mxu0 0.0
    %136 = vmatpush1.msra.mxu0 0.0
    %137 = vmatprep.subr.mxu0 0.0
    %138 = vmatpush1.msra.mxu0 0.0
    %139 = vmatprep.subr.mxu0 0.0
    %140 = vmatpush1.msra.mxu0 0.0
    %141 = vmatprep.subr.mxu0 0.0
    %142 = vmatpush1.msra.mxu0 0.0
    %143 = vmatprep.subr.mxu0 0.0
    %144 = vmatpush1.msra.mxu0 0.0
    %145 = vmatprep.mubr.f32.mxu0 0.0
    %146 = vmatmul.mubr.f32.gmra.mrb[0].mxu0 %v76
    %v147 = vpop.f32.mrb[0].mxu0
    %v148 = vadd.f32 %v62, %v147
    %v149 = vpop.f32.mrb[0].mxu0
    %v150 = vadd.f32 %v66, %v149
    %151 = vmatprep.mubr.f32.mxu0 0.0
    %152 = vmatmul.mubr.f32.gmra.mrb[0].mxu0 %v79
    %v153 = vpop.f32.mrb[0].mxu0
    %v154 = vadd.f32 %v62, %v153
    %v155 = vpop.f32.mrb[0].mxu0
    %v156 = vadd.f32 %v66, %v155
    %157 = vdwg.mxu0
    %158 = vmatprep.subr.mxu0 0.0
    %159 = vmatpush1.msra.mxu0 %v47
    %160 = vmatprep.subr.mxu0 0.0
    %161 = vmatpush1.msra.mxu0 %v50
    %162 = vmatprep.subr.mxu0 0.0
    %163 = vmatpush1.msra.mxu0 %v53
    %164 = vmatprep.subr.mxu0 0.0
    %165 = vmatpush1.msra.mxu0 %v56
    %166 = vmatprep.subr.mxu0 0.0
    %167 = vmatpush1.msra.mxu0 0.0
    %168 = vmatprep.subr.mxu0 0.0
    %169 = vmatpush1.msra.mxu0 0.0
    %170 = vmatprep.subr.mxu0 0.0
    %171 = vmatpush1.msra.mxu0 0.0
    %172 = vmatprep.subr.mxu0 0.0
    %173 = vmatpush1.msra.mxu0 0.0
    %174 = vmatprep.subr.mxu0 0.0
    %175 = vmatpush1.msra.mxu0 0.0
    %176 = vmatprep.subr.mxu0 0.0
    %177 = vmatpush1.msra.mxu0 0.0
    %178 = vmatprep.subr.mxu0 0.0
    %179 = vmatpush1.msra.mxu0 0.0
    %180 = vmatprep.subr.mxu0 0.0
    %181 = vmatpush1.msra.mxu0 0.0
    %182 = vmatprep.subr.mxu0 0.0
    %183 = vmatpush1.msra.mxu0 0.0
    %184 = vmatprep.subr.mxu0 0.0
    %185 = vmatpush1.msra.mxu0 0.0
    %186 = vmatprep.subr.mxu0 0.0
    %187 = vmatpush1.msra.mxu0 0.0
    %188 = vmatprep.subr.mxu0 0.0
    %189 = vmatpush1.msra.mxu0 0.0
    %190 = vmatprep.subr.mxu0 0.0
    %191 = vmatpush1.msra.mxu0 0.0
    %192 = vmatprep.subr.mxu0 0.0
    %193 = vmatpush1.msra.mxu0 0.0
    %194 = vmatprep.subr.mxu0 0.0
    %195 = vmatpush1.msra.mxu0 0.0
    %196 = vmatprep.subr.mxu0 0.0
    %197 = vmatpush1.msra.mxu0 0.0
    %198 = vmatprep.subr.mxu0 0.0
    %199 = vmatpush1.msra.mxu0 0.0
    %200 = vmatprep.subr.mxu0 0.0
    %201 = vmatpush1.msra.mxu0 0.0
    %202 = vmatprep.subr.mxu0 0.0
    %203 = vmatpush1.msra.mxu0 0.0
    %204 = vmatprep.subr.mxu0 0.0
    %205 = vmatpush1.msra.mxu0 0.0
    %206 = vmatprep.subr.mxu0 0.0
    %207 = vmatpush1.msra.mxu0 0.0
    %208 = vmatprep.subr.mxu0 0.0
    %209 = vmatpush1.msra.mxu0 0.0
    %210 = vmatprep.subr.mxu0 0.0
    %211 = vmatpush1.msra.mxu0 0.0
    %212 = vmatprep.subr.mxu0 0.0
    %213 = vmatpush1.msra.mxu0 0.0
    %214 = vmatprep.subr.mxu0 0.0
    %215 = vmatpush1.msra.mxu0 0.0
    %216 = vmatprep.subr.mxu0 0.0
    %217 = vmatpush1.msra.mxu0 0.0
    %218 = vmatprep.subr.mxu0 0.0
    %219 = vmatpush1.msra.mxu0 0.0
    %220 = vmatprep.subr.mxu0 0.0
    %221 = vmatpush1.msra.mxu0 0.0
    %222 = vmatprep.mubr.f32.mxu0 0.0
    %223 = vmatmul.mubr.f32.gmra.mrb[0].mxu0 %v76
    %v224 = vpop.f32.mrb[0].mxu0
    %v225 = vadd.f32 %v70, %v224
    %v226 = vpop.f32.mrb[0].mxu0
    %227 = vmatprep.mubr.f32.mxu0 0.0
    %228 = vmatmul.mubr.f32.gmra.mrb[0].mxu0 %v79
    %v229 = vpop.f32.mrb[0].mxu0
    %v230 = vadd.f32 %v70, %v229
    %v231 = vpop.f32.mrb[0].mxu0
    %232 = vdwg.mxu0
    %233 = vmatprep.subr.mxu0 0.0
    %234 = vmatpush1.xpose.msra.mxu0 %v150
    %235 = vmatprep.subr.mxu0 0.0
    %236 = vmatpush1.xpose.msra.mxu0 %v156
    %237 = vmatprep.subr.mxu0 0.0
    %238 = vmatpush1.xpose.msra.mxu0 0.0
    %239 = vmatprep.subr.mxu0 0.0
    %240 = vmatpush1.xpose.msra.mxu0 0.0
    %241 = vmatprep.subr.mxu0 0.0
    %242 = vmatpush1.xpose.msra.mxu0 0.0
    %243 = vmatprep.subr.mxu0 0.0
    %244 = vmatpush1.xpose.msra.mxu0 0.0
    %245 = vmatprep.subr.mxu0 0.0
    %246 = vmatpush1.xpose.msra.mxu0 0.0
    %247 = vmatprep.subr.mxu0 0.0
    %248 = vmatpush1.xpose.msra.mxu0 0.0
    %249 = vmatprep.subr.mxu0 0.0
    %250 = vmatpush1.xpose.msra.mxu0 0.0
    %251 = vmatprep.subr.mxu0 0.0
    %252 = vmatpush1.xpose.msra.mxu0 0.0
    %253 = vmatprep.subr.mxu0 0.0
    %254 = vmatpush1.xpose.msra.mxu0 0.0
    %255 = vmatprep.subr.mxu0 0.0
    %256 = vmatpush1.xpose.msra.mxu0 0.0
    %257 = vmatprep.subr.mxu0 0.0
    %258 = vmatpush1.xpose.msra.mxu0 0.0
    %259 = vmatprep.subr.mxu0 0.0
    %260 = vmatpush1.xpose.msra.mxu0 0.0
    %261 = vmatprep.subr.mxu0 0.0
    %262 = vmatpush1.xpose.msra.mxu0 0.0
    %263 = vmatprep.subr.mxu0 0.0
    %264 = vmatpush1.xpose.msra.mxu0 0.0
    %265 = vmatprep.subr.mxu0 0.0
    %266 = vmatpush1.xpose.msra.mxu0 0.0
    %267 = vmatprep.subr.mxu0 0.0
    %268 = vmatpush1.xpose.msra.mxu0 0.0
    %269 = vmatprep.subr.mxu0 0.0
    %270 = vmatpush1.xpose.msra.mxu0 0.0
    %271 = vmatprep.subr.mxu0 0.0
    %272 = vmatpush1.xpose.msra.mxu0 0.0
    %273 = vmatprep.subr.mxu0 0.0
    %274 = vmatpush1.xpose.msra.mxu0 0.0
    %275 = vmatprep.subr.mxu0 0.0
    %276 = vmatpush1.xpose.msra.mxu0 0.0
    %277 = vmatprep.subr.mxu0 0.0
    %278 = vmatpush1.xpose.msra.mxu0 0.0
    %279 = vmatprep.subr.mxu0 0.0
    %280 = vmatpush1.xpose.msra.mxu0 0.0
    %281 = vmatprep.subr.mxu0 0.0
    %282 = vmatpush1.xpose.msra.mxu0 0.0
    %283 = vmatprep.subr.mxu0 0.0
    %284 = vmatpush1.xpose.msra.mxu0 0.0
    %285 = vmatprep.subr.mxu0 0.0
    %286 = vmatpush1.xpose.msra.mxu0 0.0
    %287 = vmatprep.subr.mxu0 0.0
    %288 = vmatpush1.xpose.msra.mxu0 0.0
    %289 = vmatprep.subr.mxu0 0.0
    %290 = vmatpush1.xpose.msra.mxu0 0.0
    %291 = vmatprep.subr.mxu0 0.0
    %292 = vmatpush1.xpose.msra.mxu0 0.0
    %293 = vmatprep.subr.mxu0 0.0
    %294 = vmatpush1.xpose.msra.mxu0 0.0
    %295 = vmatprep.subr.mxu0 0.0
    %296 = vmatpush1.xpose.msra.mxu0 0.0
    %297 = vmatprep.mubr.f32.mxu0 0.0
    %298 = vmatmul.mubr.f32.gmra.mrb[0].mxu0 %v148
    %v299 = vpop.f32.mrb[0].mxu0
    %v300 = vadd.f32 0.0, %v299
    %v301 = vpop.f32.mrb[0].mxu0
    %302 = vmatprep.mubr.f32.mxu0 0.0
    %303 = vmatmul.mubr.f32.gmra.mrb[0].mxu0 %v154
    %v304 = vpop.f32.mrb[0].mxu0
    %v305 = vadd.f32 0.0, %v304
    %v306 = vpop.f32.mrb[0].mxu0
    %307 = vdwg.mxu0
    %v308 = vlaneseq
    %v309 = vshrl.u32 %v308, 7
    %v310 = vadd.s32 %v309, 8
    %v311 = vlaneseq
    %v312 = vand.u32 %v311, 127
    %vm313 = vcmp.ge.s32.totalorder %v309, 0
    %vm314 = vcmp.ge.s32.totalorder %v310, 0
    %vm315 = vcmp.lt.s32.totalorder %v309, 8
    %vm316 = vcmp.lt.s32.totalorder %v310, 8
    %vm317 = vmand %vm313, %vm315
    %vm318 = vmand %vm314, %vm316
    %vm319 = vcmp.ge.s32.totalorder %v312, 0
    %vm320 = vcmp.lt.s32.totalorder %v312, 8
    %vm321 = vmand %vm319, %vm320
    %vm322 = vmand %vm317, %vm321
    %vm323 = vmand %vm318, %vm321
    %vm324 = vcmp.ge.s32.totalorder %v309, 8
    %vm325 = vcmp.ge.s32.totalorder %v310, 8
    %vm326 = vcmp.lt.s32.totalorder %v309, 16
    %vm327 = vcmp.lt.s32.totalorder %v310, 16
    %vm328 = vmand %vm324, %vm326
    %vm329 = vmand %vm325, %vm327
    %vm330 = vcmp.ge.s32.totalorder %v312, 8
    %vm331 = vcmp.lt.s32.totalorder %v312, 16
    %vm332 = vmand %vm330, %vm331
    %vm333 = vmand %vm328, %vm332
    %vm334 = vmand %vm329, %vm332
    %vm335 = vmor %vm322, %vm333
    %vm336 = vmor %vm323, %vm334
    %vm337 = vcmp.ge.s32.totalorder %v309, %v312
    %vm338 = vcmp.ge.s32.totalorder %v310, %v312
    %vm339 = vmand %vm335, %vm337
    %vm340 = vmand %vm336, %vm338
    %v341 = vsel %vm339, %v300, -1e+30
    %v342 = vsel %vm340, %v305, -1e+30
    %vm343 = vcmask 130048
    %v344 = vsel %vm343, %v341, -inf
    %345 = vmax.xlane.f32.xlu0 %v344
    %v346 = vpop.xlane.xlu0 %345
    %v347 = vsel %vm343, %v342, -inf
    %348 = vmax.xlane.f32.xlu0 %v347
    %v349 = vpop.xlane.xlu0 %348
    %v350 = vsub.f32 %v341, %v346
    %v351 = vsub.f32 %v342, %v349
    %v352 = vmul.f32 %v350, 1.442695
    %v353 = vpow.pop %v352
    %v354 = vmul.f32 %v351, 1.442695
    %v355 = vpow.pop %v354
    %v356 = vsel %vm343, %v353, 0.0
    %357 = vadd.xlane.f32.xlu0 %v356
    %v358 = vpop.xlane.xlu0 %357
    %v359 = vsel %vm343, %v355, 0.0
    %360 = vadd.xlane.f32.xlu0 %v359
    %v361 = vpop.xlane.xlu0 %360
    %v362 = vrcp.pop %v358
    %v363 = vrcp.pop %v361
    %v364 = vmul.f32 %v353, %v362
    %v365 = vmul.f32 %v355, %v363
    %v366 = vrcp.pop 4.0
    %v367 = vmul.f32 %v364, %v366
    %v368 = vmul.f32 %v365, %v366
    %v369 = vfloor.f32 %v367
    %v370 = vfloor.f32 %v368
    %v372 = vsel %vm343, %v369, 0
    %v375 = vsel %vm343, %v370, 0
    %377 = vmatprep.subr.mxu0 0.0
    %378 = vmatpush1.msra.mxu0 %v225
    %379 = vmatprep.subr.mxu0 0.0
    %380 = vmatpush1.msra.mxu0 %v230
    %381 = vmatprep.subr.mxu0 0.0
    %382 = vmatpush1.msra.mxu0 0.0
    %383 = vmatprep.subr.mxu0 0.0
    %384 = vmatpush1.msra.mxu0 0.0
    %385 = vmatprep.subr.mxu0 0.0
    %386 = vmatpush1.msra.mxu0 0.0
    %387 = vmatprep.subr.mxu0 0.0
    %388 = vmatpush1.msra.mxu0 0.0
    %389 = vmatprep.subr.mxu0 0.0
    %390 = vmatpush1.msra.mxu0 0.0
    %391 = vmatprep.subr.mxu0 0.0
    %392 = vmatpush1.msra.mxu0 0.0
    %393 = vmatprep.subr.mxu0 0.0
    %394 = vmatpush1.msra.mxu0 0.0
    %395 = vmatprep.subr.mxu0 0.0
    %396 = vmatpush1.msra.mxu0 0.0
    %397 = vmatprep.subr.mxu0 0.0
    %398 = vmatpush1.msra.mxu0 0.0
    %399 = vmatprep.subr.mxu0 0.0
    %400 = vmatpush1.msra.mxu0 0.0
    %401 = vmatprep.subr.mxu0 0.0
    %402 = vmatpush1.msra.mxu0 0.0
    %403 = vmatprep.subr.mxu0 0.0
    %404 = vmatpush1.msra.mxu0 0.0
    %405 = vmatprep.subr.mxu0 0.0
    %406 = vmatpush1.msra.mxu0 0.0
    %407 = vmatprep.subr.mxu0 0.0
    %408 = vmatpush1.msra.mxu0 0.0
    %409 = vmatprep.subr.mxu0 0.0
    %410 = vmatpush1.msra.mxu0 0.0
    %411 = vmatprep.subr.mxu0 0.0
    %412 = vmatpush1.msra.mxu0 0.0
    %413 = vmatprep.subr.mxu0 0.0
    %414 = vmatpush1.msra.mxu0 0.0
    %415 = vmatprep.subr.mxu0 0.0
    %416 = vmatpush1.msra.mxu0 0.0
    %417 = vmatprep.subr.mxu0 0.0
    %418 = vmatpush1.msra.mxu0 0.0
    %419 = vmatprep.subr.mxu0 0.0
    %420 = vmatpush1.msra.mxu0 0.0
    %421 = vmatprep.subr.mxu0 0.0
    %422 = vmatpush1.msra.mxu0 0.0
    %423 = vmatprep.subr.mxu0 0.0
    %424 = vmatpush1.msra.mxu0 0.0
    %425 = vmatprep.subr.mxu0 0.0
    %426 = vmatpush1.msra.mxu0 0.0
    %427 = vmatprep.subr.mxu0 0.0
    %428 = vmatpush1.msra.mxu0 0.0
    %429 = vmatprep.subr.mxu0 0.0
    %430 = vmatpush1.msra.mxu0 0.0
    %431 = vmatprep.subr.mxu0 0.0
    %432 = vmatpush1.msra.mxu0 0.0
    %433 = vmatprep.subr.mxu0 0.0
    %434 = vmatpush1.msra.mxu0 0.0
    %435 = vmatprep.subr.mxu0 0.0
    %436 = vmatpush1.msra.mxu0 0.0
    %437 = vmatprep.subr.mxu0 0.0
    %438 = vmatpush1.msra.mxu0 0.0
    %439 = vmatprep.subr.mxu0 0.0
    %440 = vmatpush1.msra.mxu0 0.0
    %441 = vmatprep.mubr.f32.mxu0 0.0
    %442 = vmatmul.mubr.f32.gmra.mrb[0].mxu0 %v372
    %v443 = vpop.f32.mrb[0].mxu0
    %v444 = vadd.f32 0.0, %v443
    %v445 = vpop.f32.mrb[0].mxu0
    %446 = vmatprep.mubr.f32.mxu0 0.0
    %447 = vmatmul.mubr.f32.gmra.mrb[0].mxu0 %v375
    %v448 = vpop.f32.mrb[0].mxu0
    %v449 = vadd.f32 0.0, %v448
    %v450 = vpop.f32.mrb[0].mxu0
    %451 = vdwg.mxu0
    %452 = vst [vmem:[#allocation7] sm:$0xff] %v444
    %453 = vst [vmem:[#allocation7 + $0x8] sm:$0xff] %v449
    // Predicated region
    $region22: #{tpu_custom_call.1} parent=1 // pred_check
      _
    $region23: #{tpu_custom_call.1} parent=1 // pred_check_branch
      %455 = sbr.rel (0) target = $region25
    $region24: #{tpu_custom_call.1} parent=1 // pred_region
      %s457 = ssub.s32 256, 256
      %458 = vsyncadd [#allocation4], %s457
      %s459 = sshll.u32 [#allocation7], 4
      %s460 = int_to_ptr.vmem [resolvable:$true] %s459
      %465 = dma.vmem_to_hbm [thread:$0]  %s460, 256, %s3, [#allocation4], 128, 128, 8
    $region25: #{tpu_custom_call.1} parent=1 // pred_fallthru
      _
    // Predicated region
    $region26: #{tpu_custom_call.1} parent=1 // pred_check
      _
    $region27: #{tpu_custom_call.1} parent=1 // pred_check_branch
      %467 = sbr.rel (0) target = $region29
    $region28: #{tpu_custom_call.1} parent=1 // pred_region
      %468 = dma.done [#allocation4], 256
    $region29: #{tpu_custom_call.1} parent=1 // pred_fallthru
      _
    %469 = vsyncpa [#allocation3], 1
    %470 = vsyncpa [#allocation6], 1
    %471 = vsyncpa [#allocation4], 1

</llo_original>
